<compile_context>
chip_gen: v7x
topology: tpu7x:2x2x1
jax: 0.10.0
libtpu: 0.0.40
codegen_flags: <defaults>
</compile_context>

<pallas_src>
import math
import functools

import jax
import jax.numpy as jnp
from jax.experimental import pallas as pl
from jax.experimental.pallas import tpu as pltpu

_TN_CAP = 2048          # max class-dim tile (lanes)
_MIB = 1024 * 1024


def _round_up(x, m):
    return ((x + m - 1) // m) * m


def _class_padding(C):
    """Padded class dim Cp (multiple of 128) and class tile TN (divides Cp)."""
    Cp = _round_up(C, 128)
    if Cp <= _TN_CAP:
        return Cp, Cp
    Cp = _round_up(Cp, _TN_CAP)
    return Cp, _TN_CAP


def _vmem_capacity_bytes():
    """Trace-time VMEM capacity query with a conservative (v7x per-TC) fallback."""
    try:
        info = pltpu.get_tpu_info()
        cap = getattr(info, "vmem_capacity_bytes", None)
        if cap:
            return int(cap)
    except Exception:
        pass
    return 64 * _MIB


def _choose_batch_tile(B, L, TN, in_bytes, vmem_cap):
    """Pick TB (multiple of 8) under a chip-aware VMEM budget; return (TB, need)."""
    # Big VMEM (v5e/v6e, 128 MiB): large tiles pay off for mem-bound streaming.
    # Small VMEM (v7x, 64 MiB/TC): keep tiles moderate, HBM is 3.2 TB/s anyway.
    tb_cap = 1024 if vmem_cap >= 96 * _MIB else 256
    TB = min(tb_cap, _round_up(B, 8))

    # Ensure >= 2 batch grid steps when B allows, so v7x's second TC gets work.
    if B > 8 and -(-B // TB) < 2:
        TB = max(8, _round_up(-(-B // 2), 8))

    budget = min(int(vmem_cap * 0.7), 96 * _MIB)

    def need(tb):
        return (2 * tb * L * in_bytes       # x tiles, double-buffered
                + 2 * L * TN * in_bytes     # weight tile, counted double-buffered
                + 2 * TN * 4                # bias tile, counted double-buffered
                + 2 * tb * TN * 4)          # f32 output tiles, double-buffered

    while TB > 8 and need(TB) > budget:
        TB = max(8, ((TB // 2) // 8) * 8)

    return TB, need(TB)


def _linear_kernel(x_ref, w_ref, b_ref, o_ref):
    # x_ref: (TB, L), w_ref: (L, TN), b_ref: (1, TN) f32, o_ref: (TB, TN) f32
    acc = jnp.dot(x_ref[...], w_ref[...], preferred_element_type=jnp.float32)
    o_ref[...] = (acc + b_ref[...]).astype(o_ref.dtype)


def prepare_params(w, b, *, use_bf16=False):
    """One-time param prep (hoisted out of the per-call path).

    w: (C, L) float32, PyTorch nn.Linear layout.
    b: (C,)   float32.
    Returns w_p: (L, Cp), b_p: (1, Cp) float32, with Cp lane-padded.
    """
    C, L = w.shape
    Cp, _ = _class_padding(C)
    w_p = jnp.pad(jnp.asarray(w).T, ((0, 0), (0, Cp - C)))
    b_p = jnp.pad(jnp.asarray(b), (0, Cp - C)).reshape(1, Cp).astype(jnp.float32)
    if use_bf16:
        w_p = w_p.astype(jnp.bfloat16)   # MXU operand only; accumulation stays f32
    return w_p, b_p


@functools.partial(jax.jit, static_argnames=("num_classes", "use_bf16"))
def classifier_forward(d_x, w_p, b_p, *, num_classes, use_bf16=False):
    """nn.Linear forward: y = d_x @ W.T + b, returns (B, num_classes) float32."""
    B, L = d_x.shape
    L2, Cp = w_p.shape
    assert L == L2
    TN = Cp if Cp <= _TN_CAP else _TN_CAP
    assert Cp % TN == 0

    in_bytes = 2 if use_bf16 else 4
    vmem_cap = _vmem_capacity_bytes()
    TB, need = _choose_batch_tile(B, L, TN, in_bytes, vmem_cap)
    vmem_limit = int(min(max(need + 4 * _MIB, 32 * _MIB), vmem_cap))

    x = d_x.astype(jnp.bfloat16) if use_bf16 else d_x

    grid = (pl.cdiv(B, TB), Cp // TN)   # boundary batch block handled by masking

    out = pl.pallas_call(
        _linear_kernel,
        out_shape=jax.ShapeDtypeStruct((B, Cp), jnp.float32),
        grid=grid,
        in_specs=[
            pl.BlockSpec((TB, L), lambda i, j: (i, 0)),   # streamed x tiles
            pl.BlockSpec((L, TN), lambda i, j: (0, j)),   # weight tiles (resident if Cp==TN)
            pl.BlockSpec((1, TN), lambda i, j: (0, j)),   # bias tiles
        ],
        out_specs=pl.BlockSpec((TB, TN), lambda i, j: (i, j)),
        compiler_params=pltpu.CompilerParams(
            dimension_semantics=("parallel", "parallel"),
            vmem_limit_bytes=vmem_limit,
        ),
        cost_estimate=pl.CostEstimate(
            flops=2 * B * L * Cp,
            bytes_accessed=in_bytes * (B * L + L * Cp) + 4 * (Cp + B * Cp),
            transcendentals=0,
        ),
    )(x, w_p, b_p)

    if Cp != num_classes:
        out = out[:, :num_classes]
    return out


if __name__ == "__main__":
    # Small shapes consistent with the module: batch=8, L=32 features, C=8 classes.
    B, L, C = 8, 32, 8

    key = jax.random.PRNGKey(0)
    kx, kw, kb = jax.random.split(key, 3)

    # Deterministic init mimicking nn.Linear defaults: U(-1/sqrt(L), 1/sqrt(L)).
    bound = 1.0 / math.sqrt(L)
    w = jax.random.uniform(kw, (C, L), jnp.float32, -bound, bound)   # PyTorch (C, L) layout
    b = jax.random.uniform(kb, (C,), jnp.float32, -bound, bound)
    d_x = jax.random.normal(kx, (B, L), jnp.float32)

    # One-time param prep (padding / layout), then the per-call kernel.
    w_p, b_p = prepare_params(w, b, use_bf16=False)
    out = classifier_forward(d_x, w_p, b_p, num_classes=C, use_bf16=False)
    out = jax.block_until_ready(out)

    # Reference check in plain JAX (same math as PyTorch nn.Linear).
    ref = d_x @ w.T + b
    assert out.shape == (B, C)
    assert jnp.allclose(out, ref, atol=1e-5, rtol=1e-5)

    print("KERNEL_OK")
</pallas_src>

<mosaic_0001>
module attributes {stable_mosaic.version = 11 : i64} {
  func.func @_linear_kernel(%arg0: i32, %arg1: i32, %arg2: memref<8x32xf32, #tpu.memory_space<vmem>>, %arg3: memref<32x128xf32, #tpu.memory_space<vmem>>, %arg4: memref<1x128xf32, #tpu.memory_space<vmem>>, %arg5: memref<8x128xf32, #tpu.memory_space<vmem>>) attributes {dimension_semantics = [#tpu.dimension_semantics<parallel>, #tpu.dimension_semantics<parallel>], iteration_bounds = array<i64: 1, 1>, scalar_prefetch = 0 : i64, scratch_operands = 0 : i64, tpu.core_type = #tpu.core_type<tc>, window_params = [{transform_indices = @transform_0, window_bounds = array<i64: 8, 32>}, {transform_indices = @transform_1, window_bounds = array<i64: 32, 128>}, {transform_indices = @transform_2, window_bounds = array<i64: 1, 128>}, {transform_indices = @transform_3, window_bounds = array<i64: 8, 128>}]} {
    %c0 = arith.constant 0 : index
    %c0_0 = arith.constant 0 : index
    %0 = vector.load %arg2[%c0, %c0_0] : memref<8x32xf32, #tpu.memory_space<vmem>>, vector<8x32xf32>
    %c0_1 = arith.constant 0 : index
    %c0_2 = arith.constant 0 : index
    %1 = vector.load %arg3[%c0_1, %c0_2] : memref<32x128xf32, #tpu.memory_space<vmem>>, vector<32x128xf32>
    %cst = arith.constant dense<0.000000e+00> : vector<8x128xf32>
    %2 = tpu.matmul %0, %1, %cst {dimension_numbers = #tpu.dot_dimension_numbers<[1], [0], [0], [1], [0, 0, 1, 1], [], []>} : vector<8x32xf32>, vector<32x128xf32>, vector<8x128xf32> -> vector<8x128xf32>
    %c0_3 = arith.constant 0 : index
    %c0_4 = arith.constant 0 : index
    %3 = vector.load %arg4[%c0_3, %c0_4] : memref<1x128xf32, #tpu.memory_space<vmem>>, vector<1x128xf32>
    %4 = vector.broadcast %3 : vector<1x128xf32> to vector<8x128xf32>
    %5 = arith.addf %2, %4 : vector<8x128xf32>
    %c0_5 = arith.constant 0 : index
    %c0_6 = arith.constant 0 : index
    %6 = vector.load %arg5[%c0_5, %c0_6] : memref<8x128xf32, #tpu.memory_space<vmem>>, vector<8x128xf32>
    tpu.vector_store %arg5[%c0_5, %c0_6], %5 {strides = array<i32>} : memref<8x128xf32, #tpu.memory_space<vmem>>, vector<8x128xf32>,
    return
  }
  func.func @transform_0(%arg0: i32, %arg1: i32) -> (i32, i32) {
    %c0_i32 = arith.constant 0 : i32
    %c0_i32_0 = arith.constant 0 : i32
    return %arg0, %c0_i32 : i32, i32
  }
  func.func @transform_1(%arg0: i32, %arg1: i32) -> (i32, i32) {
    %c0_i32 = arith.constant 0 : i32
    %c0_i32_0 = arith.constant 0 : i32
    return %c0_i32, %arg1 : i32, i32
  }
  func.func @transform_2(%arg0: i32, %arg1: i32) -> (i32, i32) {
    %c0_i32 = arith.constant 0 : i32
    %c0_i32_0 = arith.constant 0 : i32
    return %c0_i32, %arg1 : i32, i32
  }
  func.func @transform_3(%arg0: i32, %arg1: i32) -> (i32, i32) {
    %c0_i32 = arith.constant 0 : i32
    return %arg0, %arg1 : i32, i32
  }
}

</mosaic_0001>

<llo_original>
// kernel: classifier_forward.1
$region0: #{classifier_forward.1}
  #allocation0 [shape = 'u32[]', space=smem, size = 0x4, offset = 0x4, fixed_abs, tag = 'smem constant byte address 0x4 - core index']
  #allocation1 [shape = 'u32[144,128]{1,0:T(1,128)}', space=vmem, size = 0x12000, scoped, tag = 'internal scratch']
  %s0 = inlined_call_operand.hbm [shape: f32[8,32], index: 0, kind: input, shape index: {}]
  %s1 = inlined_call_operand.hbm [shape: f32[32,128], index: 1, kind: input, shape index: {}]
  %s2 = inlined_call_operand.vmem [shape: f32[1,128], index: 2, kind: input, shape index: {}]
  %s3 = inlined_call_operand.hbm [shape: f32[8,128], index: 3, kind: output, shape index: {}]
  %s4 = sld [smem:[#allocation0]]
  $region30: #{classifier_forward.1} parent=0
    _
  %s6 = ssub.s32 1, %s4
  %s7 = scalar_select 0, %s6, %s4
  $region1: #{classifier_forward.1} parent=0
    #allocation2 [shape = 'u8[4096]{0}', space=vmem, size = 0x1000, scoped, tag = 'input window, operand 0, single buffered']
    #allocation3 [shape = 's32[1]{0}', space=sflag, size = 0x4, scoped, tag = 'scoped memory for classifier_forward.1']
    #allocation4 [shape = 's32[1]{0}', space=sflag, size = 0x4, scoped, tag = 'scoped memory for classifier_forward.1']
    #allocation5 [shape = 'u8[16384]{0}', space=vmem, size = 0x4000, scoped, tag = 'input window, operand 1, single buffered']
    #allocation6 [shape = 's32[1]{0}', space=sflag, size = 0x4, scoped, tag = 'scoped memory for classifier_forward.1']
    #allocation7 [shape = 'u8[4096]{0}', space=vmem, size = 0x1000, scoped, tag = 'output window, operand 0, single buffered']
    %8 = vsyncpa [#allocation3], 0
    %9 = vsyncpa [#allocation6], 0
    %10 = vsyncpa [#allocation4], 0
    // Predicated region
    $region2: #{classifier_forward.1} parent=1 // pred_check
      _
    $region3: #{classifier_forward.1} parent=1 // pred_check_branch
      %12 = sbr.rel (0) target = $region5
    $region4: #{classifier_forward.1} parent=1 // pred_region
      %s14 = ssub.s32 128, 128
      %15 = vsyncadd [#allocation3], %s14
      %s17 = sshll.u32 [#allocation2], 4
      %s18 = int_to_ptr.vmem [resolvable:$true] %s17
      %20 = dma.hbm_to_vmem [thread:$0]  %s0, 128, %s18, [#allocation3]
    $region5: #{classifier_forward.1} parent=1 // pred_fallthru
      _
    // Predicated region
    $region6: #{classifier_forward.1} parent=1 // pred_check
      _
    $region7: #{classifier_forward.1} parent=1 // pred_check_branch
      %22 = sbr.rel (0) target = $region9
    $region8: #{classifier_forward.1} parent=1 // pred_region
      %s24 = ssub.s32 512, 512
      %25 = vsyncadd [#allocation6], %s24
      %s26 = sshll.u32 [#allocation5], 4
      %s27 = int_to_ptr.vmem [resolvable:$true] %s26
      %32 = dma.hbm_to_vmem [thread:$0]  %s1, 512, %s27, [#allocation6], 128, 128, 8
    $region9: #{classifier_forward.1} parent=1 // pred_fallthru
      _
    // Predicated region
    $region10: #{classifier_forward.1} parent=1 // pred_check
      _
    $region11: #{classifier_forward.1} parent=1 // pred_check_branch
      %34 = sbr.rel (0) target = $region13
    $region12: #{classifier_forward.1} parent=1 // pred_region
      _
    $region13: #{classifier_forward.1} parent=1 // pred_fallthru
      _
    // Predicated region
    $region14: #{classifier_forward.1} parent=1 // pred_check
      _
    $region15: #{classifier_forward.1} parent=1 // pred_check_branch
      %36 = sbr.rel (0) target = $region17
    $region16: #{classifier_forward.1} parent=1 // pred_region
      %37 = dma.done [#allocation3], 128
    $region17: #{classifier_forward.1} parent=1 // pred_fallthru
      _
    // Predicated region
    $region18: #{classifier_forward.1} parent=1 // pred_check
      _
    $region19: #{classifier_forward.1} parent=1 // pred_check_branch
      %39 = sbr.rel (0) target = $region21
    $region20: #{classifier_forward.1} parent=1 // pred_region
      %40 = dma.done [#allocation6], 512
    $region21: #{classifier_forward.1} parent=1 // pred_fallthru
      _
    %v41 = vld [vmem:[#allocation2] sm:$0xff]
    %v42 = vld [vmem:[#allocation5] sm:$0xff]
    %v43 = vld [vmem:[#allocation5 + $0x8] sm:$0xff]
    %v44 = vld [vmem:[#allocation5 + $0x10] sm:$0xff]
    %v45 = vld [vmem:[#allocation5 + $0x18] sm:$0xff]
    %v46 = vld [vmem:[%s2] sm:$0x1]
    %v48 = vlaneseq
    %v49 = vshrl.u32 %v48, 7
    %v50 = vsub.s32 0, %v49
    %v51 = vrot.slane %v46, %v50
    %vm53 = vcmask 261120
    %v55 = vsel %vm53, %v41, 0
    %57 = vmatprep.subr.mxu0 0.0
    %58 = vmatpush1.msra.mxu0 %v42
    %59 = vmatprep.subr.mxu0 0.0
    %60 = vmatpush1.msra.mxu0 %v43
    %61 = vmatprep.subr.mxu0 0.0
    %62 = vmatpush1.msra.mxu0 %v44
    %63 = vmatprep.subr.mxu0 0.0
    %64 = vmatpush1.msra.mxu0 %v45
    %65 = vmatprep.subr.mxu0 0.0
    %66 = vmatpush1.msra.mxu0 0.0
    %67 = vmatprep.subr.mxu0 0.0
    %68 = vmatpush1.msra.mxu0 0.0
    %69 = vmatprep.subr.mxu0 0.0
    %70 = vmatpush1.msra.mxu0 0.0
    %71 = vmatprep.subr.mxu0 0.0
    %72 = vmatpush1.msra.mxu0 0.0
    %73 = vmatprep.subr.mxu0 0.0
    %74 = vmatpush1.msra.mxu0 0.0
    %75 = vmatprep.subr.mxu0 0.0
    %76 = vmatpush1.msra.mxu0 0.0
    %77 = vmatprep.subr.mxu0 0.0
    %78 = vmatpush1.msra.mxu0 0.0
    %79 = vmatprep.subr.mxu0 0.0
    %80 = vmatpush1.msra.mxu0 0.0
    %81 = vmatprep.subr.mxu0 0.0
    %82 = vmatpush1.msra.mxu0 0.0
    %83 = vmatprep.subr.mxu0 0.0
    %84 = vmatpush1.msra.mxu0 0.0
    %85 = vmatprep.subr.mxu0 0.0
    %86 = vmatpush1.msra.mxu0 0.0
    %87 = vmatprep.subr.mxu0 0.0
    %88 = vmatpush1.msra.mxu0 0.0
    %89 = vmatprep.subr.mxu0 0.0
    %90 = vmatpush1.msra.mxu0 0.0
    %91 = vmatprep.subr.mxu0 0.0
    %92 = vmatpush1.msra.mxu0 0.0
    %93 = vmatprep.subr.mxu0 0.0
    %94 = vmatpush1.msra.mxu0 0.0
    %95 = vmatprep.subr.mxu0 0.0
    %96 = vmatpush1.msra.mxu0 0.0
    %97 = vmatprep.subr.mxu0 0.0
    %98 = vmatpush1.msra.mxu0 0.0
    %99 = vmatprep.subr.mxu0 0.0
    %100 = vmatpush1.msra.mxu0 0.0
    %101 = vmatprep.subr.mxu0 0.0
    %102 = vmatpush1.msra.mxu0 0.0
    %103 = vmatprep.subr.mxu0 0.0
    %104 = vmatpush1.msra.mxu0 0.0
    %105 = vmatprep.subr.mxu0 0.0
    %106 = vmatpush1.msra.mxu0 0.0
    %107 = vmatprep.subr.mxu0 0.0
    %108 = vmatpush1.msra.mxu0 0.0
    %109 = vmatprep.subr.mxu0 0.0
    %110 = vmatpush1.msra.mxu0 0.0
    %111 = vmatprep.subr.mxu0 0.0
    %112 = vmatpush1.msra.mxu0 0.0
    %113 = vmatprep.subr.mxu0 0.0
    %114 = vmatpush1.msra.mxu0 0.0
    %115 = vmatprep.subr.mxu0 0.0
    %116 = vmatpush1.msra.mxu0 0.0
    %117 = vmatprep.subr.mxu0 0.0
    %118 = vmatpush1.msra.mxu0 0.0
    %119 = vmatprep.subr.mxu0 0.0
    %120 = vmatpush1.msra.mxu0 0.0
    %121 = vmatprep.mubr.f32.mxu0 0.0
    %122 = vmatmul.mubr.f32.gmra.mrb[0].mxu0 %v55
    %v123 = vpop.f32.mrb[0].mxu0
    %v124 = vadd.f32 %v51, %v123
    %v125 = vpop.f32.mrb[0].mxu0
    %126 = vdwg.mxu0
    %127 = vst [vmem:[#allocation7] sm:$0xff] %v124
    // Predicated region
    $region22: #{classifier_forward.1} parent=1 // pred_check
      _
    $region23: #{classifier_forward.1} parent=1 // pred_check_branch
      %129 = sbr.rel (0) target = $region25
    $region24: #{classifier_forward.1} parent=1 // pred_region
      %s131 = ssub.s32 128, 128
      %132 = vsyncadd [#allocation4], %s131
      %s134 = sshll.u32 [#allocation7], 4
      %s135 = int_to_ptr.vmem [resolvable:$true] %s134
      %137 = dma.vmem_to_hbm [thread:$0]  %s135, 128, %s3, [#allocation4]
    $region25: #{classifier_forward.1} parent=1 // pred_fallthru
      _
    // Predicated region
    $region26: #{classifier_forward.1} parent=1 // pred_check
      _
    $region27: #{classifier_forward.1} parent=1 // pred_check_branch
      %139 = sbr.rel (0) target = $region29
    $region28: #{classifier_forward.1} parent=1 // pred_region
      %140 = dma.done [#allocation4], 128
    $region29: #{classifier_forward.1} parent=1 // pred_fallthru
      _
    %141 = vsyncpa [#allocation3], 1
    %142 = vsyncpa [#allocation6], 1
    %143 = vsyncpa [#allocation4], 1

</llo_original>
